<compile_context>
chip_gen: v7x
topology: tpu7x:2x2x1
jax: 0.10.0
libtpu: 0.0.40
codegen_flags: <defaults>
</compile_context>

<pallas_src>
import functools

import jax
import jax.numpy as jnp
from jax.experimental import pallas as pl
from jax.experimental.pallas import tpu as pltpu

_EPS = 1e-8                      # torch.nn.CosineSimilarity default eps
_MIB = 1024 * 1024
_MAX_BLOCK_BATCH = 4096          # cap on rows per batch tile
_DEFAULT_F_CHUNK = 512           # lane-axis chunk for in-kernel reductions


def _round_up(x, m):
    return ((x + m - 1) // m) * m


def _chip_vmem_bytes():
    """Physical VMEM per core; falls back to the smallest generation (v7x)."""
    try:
        info = pltpu.get_tpu_info()
        cap = getattr(info, "vmem_capacity_bytes", None)
        if cap:
            return int(cap)
    except Exception:
        pass
    return 64 * _MIB


def _row_stats(a_ref, b_ref, *, n_feat, chunk, need_aa):
    """Lane-axis reductions sum(a*b), sum(b*b) [, sum(a*a)] as (TB, 1) f32.

    Chunked over the feature (lane) axis so the f32 cast temporaries stay
    bounded by ~3 * TB * chunk * 4 bytes regardless of n_feat.
    """
    tb = a_ref.shape[0]
    ab = jnp.zeros((tb, 1), jnp.float32)
    bb = jnp.zeros((tb, 1), jnp.float32)
    aa = jnp.zeros((tb, 1), jnp.float32) if need_aa else None
    for c0 in range(0, n_feat, chunk):
        c1 = min(c0 + chunk, n_feat)
        a = a_ref[:, c0:c1].astype(jnp.float32)
        b = b_ref[:, c0:c1].astype(jnp.float32)
        ab = ab + jnp.sum(a * b, axis=-1, keepdims=True)
        bb = bb + jnp.sum(b * b, axis=-1, keepdims=True)
        if need_aa:
            aa = aa + jnp.sum(a * a, axis=-1, keepdims=True)
    return ab, bb, aa


def _moon_loss_kernel(feat_ref, pos_ref, neg_ref, out_ref,
                      m_ref, s_ref, pos_logit_ref, f_nrm_ref,
                      *, inv_temperature, n_feat, chunk):
    """One (TB, F) batch tile x one negative pair per grid step.

    feat_ref/pos_ref: (TB, F)   neg_ref: (TB, F)   out_ref: (TB, 1)
    Scratch (persist across the inner negative axis): m, s, pos_logit, |f|.
    """
    k = pl.program_id(1)
    eps = jnp.float32(_EPS)

    @pl.when(k == 0)
    def _init():
        fp, p2, f2 = _row_stats(feat_ref, pos_ref, n_feat=n_feat,
                                chunk=chunk, need_aa=True)
        f_nrm = jnp.sqrt(f2)
        pos_logit = fp / jnp.maximum(f_nrm * jnp.sqrt(p2), eps) * inv_temperature
        f_nrm_ref[...] = f_nrm
        pos_logit_ref[...] = pos_logit
        m_ref[...] = pos_logit                       # running max
        s_ref[...] = jnp.ones_like(pos_logit)        # sum exp(logit - m)

    # Fold this negative into the online logsumexp.
    fn, n2, _ = _row_stats(feat_ref, neg_ref, n_feat=n_feat,
                           chunk=chunk, need_aa=False)
    neg_logit = fn / jnp.maximum(f_nrm_ref[...] * jnp.sqrt(n2), eps) * inv_temperature
    m_old = m_ref[...]
    m_new = jnp.maximum(m_old, neg_logit)
    s_ref[...] = s_ref[...] * jnp.exp(m_old - m_new) + jnp.exp(neg_logit - m_new)
    m_ref[...] = m_new

    @pl.when(k == pl.num_programs(1) - 1)
    def _finalize():
        lse = m_ref[...] + jnp.log(s_ref[...])
        out_ref[...] = (lse - pos_logit_ref[...]).astype(out_ref.dtype)


def moon_contrastive_loss(features, positive_pairs, negative_pairs,
                          temperature: float = 0.5, *, block_batch=None):
    if positive_pairs.shape[0] != 1:
        raise AssertionError(
            "Each feature can have only one positive pair; expected shape "
            f"(1, batch_size, n_features), got {positive_pairs.shape}")
    positive_pair = positive_pairs[0]
    assert features.shape == positive_pair.shape
    assert features.shape == negative_pairs.shape[1:]

    b, n_feat = features.shape
    n_pairs = negative_pairs.shape[0]
    if n_pairs == 0:
        # Single-class cross entropy (only the positive logit) is exactly 0.
        return jnp.float32(0.0)

    chunk = min(n_feat, _DEFAULT_F_CHUNK)

    # Strictest packing granule among the inputs (bf16 -> 16, int8 -> 32 sublanes).
    min_itemsize = min(features.dtype.itemsize, positive_pair.dtype.itemsize,
                       negative_pairs.dtype.itemsize)
    sublane = {4: 8, 2: 16, 1: 32}.get(min_itemsize, 8)

    # Generation-aware VMEM budgeting.
    cap = _chip_vmem_bytes()
    if cap >= 128 * _MIB:                     # v5e / v6e: 128 MiB physical VMEM
        vmem_limit = 104 * _MIB
    else:                                     # v7x: 64 MiB physical per core
        vmem_limit = min(max(cap - 16 * _MIB, 32 * _MIB), 48 * _MIB)
    usable = vmem_limit - 4 * _MIB            # headroom for output/scratch/misc

    if block_batch is None:
        # Per batch row and per pipeline step:
        #   inputs   : 2 (double buffer) * n_feat * (features + positive + one negative)
        #   f32 temps: ~3 live (TB, chunk) arrays from the chunked reductions
        per_row = 2 * n_feat * (features.dtype.itemsize
                                + positive_pair.dtype.itemsize
                                + negative_pairs.dtype.itemsize)
        per_row += 12 * chunk
        tb = usable // max(per_row, 1)
        tb = min(tb, _MAX_BLOCK_BATCH)
        # Keep ~4+ batch tiles so the "parallel" axis can feed both v7x
        # TensorCores and the pipeline has steps to overlap.
        if b > 2 * sublane:
            tb = min(tb, _round_up(pl.cdiv(b, 4), sublane))
    else:
        tb = block_batch
    tb = max(sublane, (tb // sublane) * sublane)
    tb = min(tb, _round_up(b, sublane))
    b_pad = _round_up(b, tb)

    if b_pad != b:   # zero-pad; padded rows are dropped before the mean
        pad = b_pad - b
        features = jnp.pad(features, ((0, pad), (0, 0)))
        positive_pair = jnp.pad(positive_pair, ((0, pad), (0, 0)))
        negative_pairs = jnp.pad(negative_pairs, ((0, 0), (0, pad), (0, 0)))

    kernel = functools.partial(_moon_loss_kernel,
                               inv_temperature=float(1.0 / temperature),
                               n_feat=n_feat, chunk=chunk)

    per_example = pl.pallas_call(
        kernel,
        out_shape=jax.ShapeDtypeStruct((b_pad, 1), jnp.float32),
        grid=(b_pad // tb, n_pairs),
        in_specs=[
            # features / positive pair: index_map independent of k -> no re-DMA.
            pl.BlockSpec((tb, n_feat), lambda i, k: (i, 0)),
            pl.BlockSpec((tb, n_feat), lambda i, k: (i, 0)),
            # one negative pair per inner grid step, double-buffered by Pallas.
            pl.BlockSpec((pl.Squeezed(), tb, n_feat), lambda i, k: (k, i, 0)),
        ],
        out_specs=pl.BlockSpec((tb, 1), lambda i, k: (i, 0)),
        scratch_shapes=[pltpu.VMEM((tb, 1), jnp.float32)] * 4,
        compiler_params=pltpu.CompilerParams(
            dimension_semantics=("parallel", "arbitrary"),
            vmem_limit_bytes=int(vmem_limit)),
    )(features, positive_pair, negative_pairs)

    # Mean over the real (unpadded) batch.
    return jnp.sum(per_example[:b, 0]) / b


def _reference_loss(features, positive_pairs, negative_pairs, temperature=0.5):
    """Pure-JAX (f32) reference mirroring the PyTorch forward."""
    features = features.astype(jnp.float32)
    positive_pairs = positive_pairs.astype(jnp.float32)
    negative_pairs = negative_pairs.astype(jnp.float32)

    def cos(a, bb):
        num = jnp.sum(a * bb, axis=-1)
        den = jnp.maximum(jnp.linalg.norm(a, axis=-1) *
                          jnp.linalg.norm(bb, axis=-1), _EPS)
        return num / den

    pos = positive_pairs[0]
    pos_sim = cos(features, pos)                                     # (B,)
    neg_sim = cos(features[None, :, :], negative_pairs)              # (P, B)
    logits = jnp.concatenate([pos_sim[:, None], neg_sim.T], axis=1)  # (B, 1+P)
    logits = logits / temperature
    log_probs = jax.nn.log_softmax(logits, axis=-1)
    return -jnp.mean(log_probs[:, 0])


if __name__ == "__main__":
    key = jax.random.PRNGKey(0)

    # Test 1: canonical small shapes, single batch tile, P streamed over grid.
    k1, k2, k3 = jax.random.split(key, 3)
    batch_size, n_features, n_pairs = 8, 32, 3
    features = jax.random.normal(k1, (batch_size, n_features), jnp.float32)
    positive_pairs = jax.random.normal(k2, (1, batch_size, n_features), jnp.float32)
    negative_pairs = jax.random.normal(k3, (n_pairs, batch_size, n_features), jnp.float32)

    loss = moon_contrastive_loss(features, positive_pairs, negative_pairs,
                                 temperature=0.5)
    loss = jax.block_until_ready(loss)
    ref = _reference_loss(features, positive_pairs, negative_pairs, temperature=0.5)
    assert jnp.allclose(loss, ref, rtol=1e-5, atol=1e-5), (loss, ref)

    # Test 2: non-divisible batch + forced small tile -> multi-tile grid + padding.
    k4, k5, k6 = jax.random.split(jax.random.PRNGKey(1), 3)
    b2, f2, p2 = 20, 128, 4
    feats2 = jax.random.normal(k4, (b2, f2), jnp.float32)
    pos2 = jax.random.normal(k5, (1, b2, f2), jnp.float32)
    neg2 = jax.random.normal(k6, (p2, b2, f2), jnp.float32)

    loss2 = moon_contrastive_loss(feats2, pos2, neg2, temperature=0.5, block_batch=8)
    loss2 = jax.block_until_ready(loss2)
    ref2 = _reference_loss(feats2, pos2, neg2, temperature=0.5)
    assert jnp.allclose(loss2, ref2, rtol=1e-5, atol=1e-5), (loss2, ref2)

    # Test 3: mixed dtypes (bf16 features/positives, f32 negatives) -> strict
    # sublane granule (16) + in-kernel per-chunk upcast; f32 accumulation.
    k7, k8, k9 = jax.random.split(jax.random.PRNGKey(2), 3)
    b3, f3, p3 = 16, 64, 2
    feats3 = jax.random.normal(k7, (b3, f3), jnp.float32).astype(jnp.bfloat16)
    pos3 = jax.random.normal(k8, (1, b3, f3), jnp.float32).astype(jnp.bfloat16)
    neg3 = jax.random.normal(k9, (p3, b3, f3), jnp.float32)

    loss3 = moon_contrastive_loss(feats3, pos3, neg3, temperature=0.5)
    loss3 = jax.block_until_ready(loss3)
    ref3 = _reference_loss(feats3, pos3, neg3, temperature=0.5)
    assert jnp.allclose(loss3, ref3, rtol=1e-4, atol=1e-4), (loss3, ref3)

    print("KERNEL_OK")
</pallas_src>

<mosaic_0001>
module attributes {stable_mosaic.version = 11 : i64} {
  func.func @_moon_loss_kernel(%arg0: i32, %arg1: i32, %arg2: memref<8x32xf32, #tpu.memory_space<vmem>>, %arg3: memref<8x32xf32, #tpu.memory_space<vmem>>, %arg4: memref<1x8x32xf32, #tpu.memory_space<vmem>>, %arg5: memref<8x1xf32, #tpu.memory_space<vmem>>, %arg6: memref<8x1xf32, #tpu.memory_space<vmem>>, %arg7: memref<8x1xf32, #tpu.memory_space<vmem>>, %arg8: memref<8x1xf32, #tpu.memory_space<vmem>>, %arg9: memref<8x1xf32, #tpu.memory_space<vmem>>) attributes {dimension_semantics = [#tpu.dimension_semantics<parallel>, #tpu.dimension_semantics<arbitrary>], iteration_bounds = array<i64: 1, 3>, scalar_prefetch = 0 : i64, scratch_operands = 4 : i64, tpu.core_type = #tpu.core_type<tc>, window_params = [{transform_indices = @transform_0, window_bounds = array<i64: 8, 32>}, {transform_indices = @transform_1, window_bounds = array<i64: 8, 32>}, {transform_indices = @transform_2, window_bounds = array<i64: 1, 8, 32>}, {transform_indices = @transform_3, window_bounds = array<i64: 8, 1>}]} {
    %c0_i32 = arith.constant 0 : i32
    %0 = arith.cmpi eq, %arg1, %c0_i32 : i32
    %1 = arith.extui %0 : i1 to i32
    %cst = arith.constant 9.99999993E-9 : f32
    %c0_i32_0 = arith.constant 0 : i32
    %2 = arith.cmpi ne, %1, %c0_i32_0 : i32
    scf.if %2 {
      %cst_22 = arith.constant 0.000000e+00 : f32
      %38 = vector.broadcast %cst_22 : f32 to vector<8x1xf32>
      %cst_23 = arith.constant 0.000000e+00 : f32
      %39 = vector.broadcast %cst_23 : f32 to vector<8x1xf32>
      %cst_24 = arith.constant 0.000000e+00 : f32
      %40 = vector.broadcast %cst_24 : f32 to vector<8x1xf32>
      %c0_25 = arith.constant 0 : index
      %c0_26 = arith.constant 0 : index
      %41 = vector.load %arg2[%c0_25, %c0_26] : memref<8x32xf32, #tpu.memory_space<vmem>>, vector<8x32xf32>
      %c0_27 = arith.constant 0 : index
      %c0_28 = arith.constant 0 : index
      %42 = vector.load %arg3[%c0_27, %c0_28] : memref<8x32xf32, #tpu.memory_space<vmem>>, vector<8x32xf32>
      %43 = arith.mulf %41, %42 : vector<8x32xf32>
      %cst_29 = arith.constant dense<0.000000e+00> : vector<8xf32>
      %44 = vector.multi_reduction <add>, %43, %cst_29 [1] : vector<8x32xf32> to vector<8xf32>
      %45 = vector.shape_cast %44 : vector<8xf32> to vector<8x1xf32>
      %46 = arith.addf %38, %45 : vector<8x1xf32>
      %47 = arith.mulf %42, %42 : vector<8x32xf32>
      %cst_30 = arith.constant dense<0.000000e+00> : vector<8xf32>
      %48 = vector.multi_reduction <add>, %47, %cst_30 [1] : vector<8x32xf32> to vector<8xf32>
      %49 = vector.shape_cast %48 : vector<8xf32> to vector<8x1xf32>
      %50 = arith.addf %39, %49 : vector<8x1xf32>
      %51 = arith.mulf %41, %41 : vector<8x32xf32>
      %cst_31 = arith.constant dense<0.000000e+00> : vector<8xf32>
      %52 = vector.multi_reduction <add>, %51, %cst_31 [1] : vector<8x32xf32> to vector<8xf32>
      %53 = vector.shape_cast %52 : vector<8xf32> to vector<8x1xf32>
      %54 = arith.addf %40, %53 : vector<8x1xf32>
      %55 = math.sqrt %54 : vector<8x1xf32>
      %56 = math.sqrt %50 : vector<8x1xf32>
      %57 = arith.mulf %55, %56 : vector<8x1xf32>
      %58 = vector.broadcast %cst : f32 to vector<8x1xf32>
      %59 = arith.maximumf %57, %58 : vector<8x1xf32>
      %60 = arith.divf %46, %59 : vector<8x1xf32>
      %cst_32 = arith.constant 2.000000e+00 : f32
      %61 = vector.broadcast %cst_32 : f32 to vector<8x1xf32>
      %62 = arith.mulf %60, %61 : vector<8x1xf32>
      %c0_33 = arith.constant 0 : index
      %c0_34 = arith.constant 0 : index
      %63 = vector.load %arg9[%c0_33, %c0_34] : memref<8x1xf32, #tpu.memory_space<vmem>>, vector<8x1xf32>
      tpu.vector_store %arg9[%c0_33, %c0_34], %55 {strides = array<i32>} : memref<8x1xf32, #tpu.memory_space<vmem>>, vector<8x1xf32>,
      %c0_35 = arith.constant 0 : index
      %c0_36 = arith.constant 0 : index
      %64 = vector.load %arg8[%c0_35, %c0_36] : memref<8x1xf32, #tpu.memory_space<vmem>>, vector<8x1xf32>
      tpu.vector_store %arg8[%c0_35, %c0_36], %62 {strides = array<i32>} : memref<8x1xf32, #tpu.memory_space<vmem>>, vector<8x1xf32>,
      %c0_37 = arith.constant 0 : index
      %c0_38 = arith.constant 0 : index
      %65 = vector.load %arg6[%c0_37, %c0_38] : memref<8x1xf32, #tpu.memory_space<vmem>>, vector<8x1xf32>
      tpu.vector_store %arg6[%c0_37, %c0_38], %62 {strides = array<i32>} : memref<8x1xf32, #tpu.memory_space<vmem>>, vector<8x1xf32>,
      %cst_39 = arith.constant 1.000000e+00 : f32
      %66 = vector.broadcast %cst_39 : f32 to vector<8x1xf32>
      %c0_40 = arith.constant 0 : index
      %c0_41 = arith.constant 0 : index
      %67 = vector.load %arg7[%c0_40, %c0_41] : memref<8x1xf32, #tpu.memory_space<vmem>>, vector<8x1xf32>
      tpu.vector_store %arg7[%c0_40, %c0_41], %66 {strides = array<i32>} : memref<8x1xf32, #tpu.memory_space<vmem>>, vector<8x1xf32>,
    } else {
    }
    %cst_1 = arith.constant 0.000000e+00 : f32
    %3 = vector.broadcast %cst_1 : f32 to vector<8x1xf32>
    %cst_2 = arith.constant 0.000000e+00 : f32
    %4 = vector.broadcast %cst_2 : f32 to vector<8x1xf32>
    %c0 = arith.constant 0 : index
    %c0_3 = arith.constant 0 : index
    %5 = vector.load %arg2[%c0, %c0_3] : memref<8x32xf32, #tpu.memory_space<vmem>>, vector<8x32xf32>
    %c0_4 = arith.constant 0 : index
    %c0_5 = arith.constant 0 : index
    %c0_6 = arith.constant 0 : index
    %6 = vector.load %arg4[%c0_4, %c0_5, %c0_6] : memref<1x8x32xf32, #tpu.memory_space<vmem>>, vector<1x8x32xf32>
    %7 = vector.shape_cast %6 : vector<1x8x32xf32> to vector<8x32xf32>
    %8 = arith.mulf %5, %7 : vector<8x32xf32>
    %cst_7 = arith.constant dense<0.000000e+00> : vector<8xf32>
    %9 = vector.multi_reduction <add>, %8, %cst_7 [1] : vector<8x32xf32> to vector<8xf32>
    %10 = vector.shape_cast %9 : vector<8xf32> to vector<8x1xf32>
    %11 = arith.addf %3, %10 : vector<8x1xf32>
    %12 = arith.mulf %7, %7 : vector<8x32xf32>
    %cst_8 = arith.constant dense<0.000000e+00> : vector<8xf32>
    %13 = vector.multi_reduction <add>, %12, %cst_8 [1] : vector<8x32xf32> to vector<8xf32>
    %14 = vector.shape_cast %13 : vector<8xf32> to vector<8x1xf32>
    %15 = arith.addf %4, %14 : vector<8x1xf32>
    %c0_9 = arith.constant 0 : index
    %c0_10 = arith.constant 0 : index
    %16 = vector.load %arg9[%c0_9, %c0_10] : memref<8x1xf32, #tpu.memory_space<vmem>>, vector<8x1xf32>
    %17 = math.sqrt %15 : vector<8x1xf32>
    %18 = arith.mulf %16, %17 : vector<8x1xf32>
    %cst_11 = arith.constant 9.99999993E-9 : f32
    %19 = vector.broadcast %cst_11 : f32 to vector<8x1xf32>
    %20 = arith.maximumf %18, %19 : vector<8x1xf32>
    %21 = arith.divf %11, %20 : vector<8x1xf32>
    %cst_12 = arith.constant 2.000000e+00 : f32
    %22 = vector.broadcast %cst_12 : f32 to vector<8x1xf32>
    %23 = arith.mulf %21, %22 : vector<8x1xf32>
    %c0_13 = arith.constant 0 : index
    %c0_14 = arith.constant 0 : index
    %24 = vector.load %arg6[%c0_13, %c0_14] : memref<8x1xf32, #tpu.memory_space<vmem>>, vector<8x1xf32>
    %25 = arith.maximumf %24, %23 : vector<8x1xf32>
    %c0_15 = arith.constant 0 : index
    %c0_16 = arith.constant 0 : index
    %26 = vector.load %arg7[%c0_15, %c0_16] : memref<8x1xf32, #tpu.memory_space<vmem>>, vector<8x1xf32>
    %27 = arith.subf %24, %25 : vector<8x1xf32>
    %28 = math.exp %27 : vector<8x1xf32>
    %29 = arith.mulf %26, %28 : vector<8x1xf32>
    %30 = arith.subf %23, %25 : vector<8x1xf32>
    %31 = math.exp %30 : vector<8x1xf32>
    %32 = arith.addf %29, %31 : vector<8x1xf32>
    %c0_17 = arith.constant 0 : index
    %c0_18 = arith.constant 0 : index
    %33 = vector.load %arg7[%c0_17, %c0_18] : memref<8x1xf32, #tpu.memory_space<vmem>>, vector<8x1xf32>
    tpu.vector_store %arg7[%c0_17, %c0_18], %32 {strides = array<i32>} : memref<8x1xf32, #tpu.memory_space<vmem>>, vector<8x1xf32>,
    %c0_19 = arith.constant 0 : index
    %c0_20 = arith.constant 0 : index
    %34 = vector.load %arg6[%c0_19, %c0_20] : memref<8x1xf32, #tpu.memory_space<vmem>>, vector<8x1xf32>
    tpu.vector_store %arg6[%c0_19, %c0_20], %25 {strides = array<i32>} : memref<8x1xf32, #tpu.memory_space<vmem>>, vector<8x1xf32>,
    %c2_i32 = arith.constant 2 : i32
    %35 = arith.cmpi eq, %arg1, %c2_i32 : i32
    %36 = arith.extui %35 : i1 to i32
    %c0_i32_21 = arith.constant 0 : i32
    %37 = arith.cmpi ne, %36, %c0_i32_21 : i32
    scf.if %37 {
      %c0_22 = arith.constant 0 : index
      %c0_23 = arith.constant 0 : index
      %38 = vector.load %arg6[%c0_22, %c0_23] : memref<8x1xf32, #tpu.memory_space<vmem>>, vector<8x1xf32>
      %c0_24 = arith.constant 0 : index
      %c0_25 = arith.constant 0 : index
      %39 = vector.load %arg7[%c0_24, %c0_25] : memref<8x1xf32, #tpu.memory_space<vmem>>, vector<8x1xf32>
      %40 = math.log %39 : vector<8x1xf32>
      %41 = arith.addf %38, %40 : vector<8x1xf32>
      %c0_26 = arith.constant 0 : index
      %c0_27 = arith.constant 0 : index
      %42 = vector.load %arg8[%c0_26, %c0_27] : memref<8x1xf32, #tpu.memory_space<vmem>>, vector<8x1xf32>
      %43 = arith.subf %41, %42 : vector<8x1xf32>
      %c0_28 = arith.constant 0 : index
      %c0_29 = arith.constant 0 : index
      %44 = vector.load %arg5[%c0_28, %c0_29] : memref<8x1xf32, #tpu.memory_space<vmem>>, vector<8x1xf32>
      tpu.vector_store %arg5[%c0_28, %c0_29], %43 {strides = array<i32>} : memref<8x1xf32, #tpu.memory_space<vmem>>, vector<8x1xf32>,
    } else {
    }
    return
  }
  func.func @transform_0(%arg0: i32, %arg1: i32) -> (i32, i32) {
    %c0_i32 = arith.constant 0 : i32
    %c0_i32_0 = arith.constant 0 : i32
    return %arg0, %c0_i32 : i32, i32
  }
  func.func @transform_1(%arg0: i32, %arg1: i32) -> (i32, i32) {
    %c0_i32 = arith.constant 0 : i32
    %c0_i32_0 = arith.constant 0 : i32
    return %arg0, %c0_i32 : i32, i32
  }
  func.func @transform_2(%arg0: i32, %arg1: i32) -> (i32, i32, i32) {
    %c0_i32 = arith.constant 0 : i32
    %c0_i32_0 = arith.constant 0 : i32
    return %arg1, %arg0, %c0_i32 : i32, i32, i32
  }
  func.func @transform_3(%arg0: i32, %arg1: i32) -> (i32, i32) {
    %c0_i32 = arith.constant 0 : i32
    %c0_i32_0 = arith.constant 0 : i32
    return %arg0, %c0_i32 : i32, i32
  }
}

</mosaic_0001>

<llo_original>
// kernel: tpu_custom_call.1
$region0: #{tpu_custom_call.1}
  #allocation0 [shape = 'u32[]', space=smem, size = 0x4, offset = 0x4, fixed_abs, tag = 'smem constant byte address 0x4 - core index']
  #allocation1 [shape = 'u32[144,128]{1,0:T(1,128)}', space=vmem, size = 0x12000, scoped, tag = 'internal scratch']
  #allocation2 [shape = 'f32[8,1]{1,0:T(8,128)}', space=vmem, size = 0x1000, scoped, tag = 'scratch operand']
  #allocation3 [shape = 'f32[8,1]{1,0:T(8,128)}', space=vmem, size = 0x1000, scoped, tag = 'scratch operand']
  #allocation4 [shape = 'f32[8,1]{1,0:T(8,128)}', space=vmem, size = 0x1000, scoped, tag = 'scratch operand']
  #allocation5 [shape = 'f32[8,1]{1,0:T(8,128)}', space=vmem, size = 0x1000, scoped, tag = 'scratch operand']
  %s0 = inlined_call_operand.hbm [shape: f32[8,32], index: 0, kind: input, shape index: {}]
  %s1 = inlined_call_operand.hbm [shape: f32[8,32], index: 1, kind: input, shape index: {}]
  %s2 = inlined_call_operand.hbm [shape: f32[3,8,32], index: 2, kind: input, shape index: {}]
  %s3 = inlined_call_operand.vmem [shape: f32[8,1], index: 3, kind: output, shape index: {}]
  %s4 = sld [smem:[#allocation0]]
  $region65: #{tpu_custom_call.1} parent=0
    _
  %s6 = ssub.s32 1, %s4
  %s7 = scalar_select 0, %s6, %s4
  $region1: #{tpu_custom_call.1} parent=0
    #allocation6 [shape = 'u8[4096]{0}', space=vmem, size = 0x1000, scoped, tag = 'input window, operand 0, single buffered']
    #allocation7 [shape = 's32[2]{0}', space=sflag, size = 0x8, scoped, tag = 'scoped memory for tpu_custom_call.1']
    #allocation8 [shape = 'u8[4096]{0}', space=vmem, size = 0x1000, scoped, tag = 'input window, operand 1, single buffered']
    #allocation9 [shape = 's32[1]{0}', space=sflag, size = 0x4, scoped, tag = 'scoped memory for tpu_custom_call.1']
    #allocation10 [shape = 'u8[8192]{0}', space=vmem, size = 0x2000, scoped, tag = 'input window, operand 2']
    %8 = vsyncpa [#allocation7], 0
    %9 = vsyncpa [#allocation9], 0
    loop: start=0, step=1, limit=5
    $region2: #{tpu_custom_call.1} parent=1 // loop_pre_header
      _
    $region3: #{tpu_custom_call.1} parent=1 // loop_header
      %s11 = sphi 0, %s15
      %p12 = scmp.ge.s32.totalorder %s11, 5
      %s18 = sphi 0, %s30
      %s19 = sphi 0, %s26
      %s20 = sphi 0, %s18
      %s21 = sphi 0, %s19
      %s22 = sphi 0, %s20
      %s23 = sphi 0, %s21
      %s33 = sphi 0, %s35
      %s36 = sphi 0, %s33
      %s37 = sphi 0, %s36
      %s53 = sphi 0, %s37
      %s59 = sphi 0, %s61
      %s62 = sphi 0, %s59
      %s63 = sphi 0, %s62
      %s79 = sphi 0, %s63
      %s87 = sphi 0, %s89
      %s90 = sphi 0, %s87
      %s91 = sphi 0, %s90
      %s107 = sphi 0, %s91
      %s113 = sphi 0, %s115
      %s116 = sphi 0, %s113
      %s117 = sphi 0, %s116
      %s133 = sphi 0, %s117
    $region4: #{tpu_custom_call.1} parent=1 // loop_header_branch
      %14 = sbr.rel (%p12) target = $region8
    $region5: #{tpu_custom_call.1} parent=1 // loop_body
      %s16 = ssub.s32 %s11, 1
      %s17 = ssub.s32 %s11, 2
      %s24 = sadd.s32 1, %s19
      %p25 = scmp.ge.s32.totalorder %s24, 3
      %s26 = scalar_select %p25, 0, %s24
      %s27 = sadd.s32 1, %s18
      %s28 = scalar_select %p25, %s27, %s18
      %p29 = scmp.ge.s32.totalorder %s28, 1
      %s30 = scalar_select %p29, 0, %s28
      %s31 = ssub.s32 %s18, %s30
      %p32 = scmp.eq.s32.totalorder %s31, 0
      %s34 = sadd.s32 %s33, 1
      %s35 = scalar_select %p32, %s33, %s34
      %p38 = pneg %p32
      %p39 = scmp.eq.s32.totalorder %s11, 2
      %p40 = por %p38, %p39
      %p41 = scmp.ne.s32.totalorder %s33, %s36
      %p42 = scmp.eq.s32.totalorder %s11, 0
      %p43 = por %p41, %p42
      %p44 = scmp.ne.s32.totalorder %s33, %s36
      %p45 = scmp.eq.s32.totalorder %s16, 2
      %p46 = por %p44, %p45
      %p47 = scmp.ne.s32.totalorder %s36, %s37
      %p48 = scmp.eq.s32.totalorder %s16, 0
      %p49 = por %p47, %p48
      %p50 = scmp.ne.s32.totalorder %s36, %s37
      %p51 = scmp.eq.s32.totalorder %s17, 2
      %p52 = por %p50, %p51
      %p54 = scmp.ne.s32.totalorder %s37, %s53
      %p55 = scmp.eq.s32.totalorder %s17, 0
      %p56 = por %p54, %p55
      %s57 = ssub.s32 %s18, %s30
      %p58 = scmp.eq.s32.totalorder %s57, 0
      %s60 = sadd.s32 %s59, 1
      %s61 = scalar_select %p58, %s59, %s60
      %p64 = pneg %p58
      %p65 = scmp.eq.s32.totalorder %s11, 2
      %p66 = por %p64, %p65
      %p67 = scmp.ne.s32.totalorder %s59, %s62
      %p68 = scmp.eq.s32.totalorder %s11, 0
      %p69 = por %p67, %p68
      %p70 = scmp.ne.s32.totalorder %s59, %s62
      %p71 = scmp.eq.s32.totalorder %s16, 2
      %p72 = por %p70, %p71
      %p73 = scmp.ne.s32.totalorder %s62, %s63
      %p74 = scmp.eq.s32.totalorder %s16, 0
      %p75 = por %p73, %p74
      %p76 = scmp.ne.s32.totalorder %s62, %s63
      %p77 = scmp.eq.s32.totalorder %s17, 2
      %p78 = por %p76, %p77
      %p80 = scmp.ne.s32.totalorder %s63, %s79
      %p81 = scmp.eq.s32.totalorder %s17, 0
      %p82 = por %p80, %p81
      %s83 = ssub.s32 %s19, %s26
      %s84 = ssub.s32 %s18, %s30
      %s85 = sor.u32 %s83, %s84
      %p86 = scmp.eq.s32.totalorder %s85, 0
      %s88 = sadd.s32 %s87, 1
      %s89 = scalar_select %p86, %s87, %s88
      %p92 = pneg %p86
      %p93 = scmp.eq.s32.totalorder %s11, 2
      %p94 = por %p92, %p93
      %p95 = scmp.ne.s32.totalorder %s87, %s90
      %p96 = scmp.eq.s32.totalorder %s11, 0
      %p97 = por %p95, %p96
      %p98 = scmp.ne.s32.totalorder %s87, %s90
      %p99 = scmp.eq.s32.totalorder %s16, 2
      %p100 = por %p98, %p99
      %p101 = scmp.ne.s32.totalorder %s90, %s91
      %p102 = scmp.eq.s32.totalorder %s16, 0
      %p103 = por %p101, %p102
      %p104 = scmp.ne.s32.totalorder %s90, %s91
      %p105 = scmp.eq.s32.totalorder %s17, 2
      %p106 = por %p104, %p105
      %p108 = scmp.ne.s32.totalorder %s91, %s107
      %p109 = scmp.eq.s32.totalorder %s17, 0
      %p110 = por %p108, %p109
      %s111 = ssub.s32 %s18, %s30
      %p112 = scmp.eq.s32.totalorder %s111, 0
      %s114 = sadd.s32 %s113, 1
      %s115 = scalar_select %p112, %s113, %s114
      %p118 = pneg %p112
      %p119 = scmp.eq.s32.totalorder %s11, 2
      %p120 = por %p118, %p119
      %p121 = scmp.ne.s32.totalorder %s113, %s116
      %p122 = scmp.eq.s32.totalorder %s11, 0
      %p123 = por %p121, %p122
      %p124 = scmp.ne.s32.totalorder %s113, %s116
      %p125 = scmp.eq.s32.totalorder %s16, 2
      %p126 = por %p124, %p125
      %p127 = scmp.ne.s32.totalorder %s116, %s117
      %p128 = scmp.eq.s32.totalorder %s16, 0
      %p129 = por %p127, %p128
      %p130 = scmp.ne.s32.totalorder %s116, %s117
      %p131 = scmp.eq.s32.totalorder %s17, 2
      %p132 = por %p130, %p131
      %p134 = scmp.ne.s32.totalorder %s117, %s133
      %p135 = scmp.eq.s32.totalorder %s17, 0
      %p136 = por %p134, %p135
      %p137 = scmp.le.s32.totalorder 1, %s11
      %p138 = scmp.lt.s32.totalorder %s11, 4
      %p139 = pnand %p137, %p138
      %p140 = pneg %p139
      // Predicated region
      $region9: #{tpu_custom_call.1} parent=5 // pred_check
        _
      $region10: #{tpu_custom_call.1} parent=5 // pred_check_branch
        %142 = sbr.rel (%p139) target = $region12
      $region11: #{tpu_custom_call.1} parent=5 // pred_region
        %s143 = ssub.s32 %s11, 1
        // Predicated region
        $region13: #{tpu_custom_call.1} parent=11 // pred_check
          %p144 = pneg %p49
        $region14: #{tpu_custom_call.1} parent=11 // pred_check_branch
          %146 = sbr.rel (%p144) target = $region16
        $region15: #{tpu_custom_call.1} parent=11 // pred_region
          %s148 = ssub.s32 128, 128
          %149 = vsyncadd [#allocation7], %s148
          %s150 = smul.addr %s20, 128
          %s151 = scalar_lea.hbm %s0, %s150
          %s153 = sshll.u32 [#allocation6], 4
          %s154 = int_to_ptr.vmem [resolvable:$true] %s153
          %156 = dma.hbm_to_vmem [thread:$0]  %s151, 128, %s154, [#allocation7]
        $region16: #{tpu_custom_call.1} parent=11 // pred_fallthru
          _
        // Predicated region
        $region17: #{tpu_custom_call.1} parent=11 // pred_check
          %p157 = pneg %p75
        $region18: #{tpu_custom_call.1} parent=11 // pred_check_branch
          %159 = sbr.rel (%p157) target = $region20
        $region19: #{tpu_custom_call.1} parent=11 // pred_region
          %s161 = ssub.s32 128, 128
          %162 = vsyncadd [#allocation9], %s161
          %s163 = smul.addr %s20, 128
          %s164 = scalar_lea.hbm %s1, %s163
          %s166 = sshll.u32 [#allocation8], 4
          %s167 = int_to_ptr.vmem [resolvable:$true] %s166
          %169 = dma.hbm_to_vmem [thread:$0]  %s164, 128, %s167, [#allocation9]
        $region20: #{tpu_custom_call.1} parent=11 // pred_fallthru
          _
      $region12: #{tpu_custom_call.1} parent=5 // pred_fallthru
        _
      %p170 = scmp.lt.s32.totalorder %s11, 3
      // Predicated region
      $region21: #{tpu_custom_call.1} parent=5 // pred_check
        %p171 = pneg %p170
      $region22: #{tpu_custom_call.1} parent=5 // pred_check_branch
        %173 = sbr.rel (%p171) target = $region24
      $region23: #{tpu_custom_call.1} parent=5 // pred_region
        // Predicated region
        $region25: #{tpu_custom_call.1} parent=23 // pred_check
          %p174 = pneg %p97
        $region26: #{tpu_custom_call.1} parent=23 // pred_check_branch
          %176 = sbr.rel (%p174) target = $region28
        $region27: #{tpu_custom_call.1} parent=23 // pred_region
          %s177 = sand.u32 %s11, 1
          %s178 = scalar_lea.sflag [#allocation7], %s177
          %s179 = sand.u32 %s87, 1
          %s180 = smul.addr %s179, 8
          %s181 = scalar_lea.vmem [#allocation10], %s180
          %s183 = ssub.s32 128, 128
          %184 = vsyncadd %s178, %s183
          %s185 = sadd.s32 %s18, %s19
          %s186 = smul.addr %s185, 128
          %s187 = scalar_lea.hbm %s2, %s186
          %s189 = sshll.u32 %s181, 4
          %s190 = int_to_ptr.vmem [resolvable:$true] %s189
          %192 = dma.hbm_to_vmem [thread:$0]  %s187, 128, %s190, %s178
        $region28: #{tpu_custom_call.1} parent=23 // pred_fallthru
          _
      $region24: #{tpu_custom_call.1} parent=5 // pred_fallthru
        _
      %p193 = scmp.le.s32.totalorder 1, %s11
      %p194 = scmp.lt.s32.totalorder %s11, 4
      %p195 = pnand %p193, %p194
      %p196 = pneg %p195
      // Predicated region
      $region29: #{tpu_custom_call.1} parent=5 // pred_check
        _
      $region30: #{tpu_custom_call.1} parent=5 // pred_check_branch
        %198 = sbr.rel (%p195) target = $region32
      $region31: #{tpu_custom_call.1} parent=5 // pred_region
        %s199 = ssub.s32 %s11, 1
        // Predicated region
        $region33: #{tpu_custom_call.1} parent=31 // pred_check
          %p200 = pneg %p49
        $region34: #{tpu_custom_call.1} parent=31 // pred_check_branch
          %202 = sbr.rel (%p200) target = $region36
        $region35: #{tpu_custom_call.1} parent=31 // pred_region
          %203 = dma.done [#allocation7], 128
        $region36: #{tpu_custom_call.1} parent=31 // pred_fallthru
          _
        // Predicated region
        $region37: #{tpu_custom_call.1} parent=31 // pred_check
          %p204 = pneg %p75
        $region38: #{tpu_custom_call.1} parent=31 // pred_check_branch
          %206 = sbr.rel (%p204) target = $region40
        $region39: #{tpu_custom_call.1} parent=31 // pred_region
          %207 = dma.done [#allocation9], 128
        $region40: #{tpu_custom_call.1} parent=31 // pred_fallthru
          _
        %s208 = sand.u32 %s16, 1
        %s209 = scalar_lea.sflag [#allocation7], %s208
        %s210 = sand.u32 %s90, 1
        %s211 = smul.addr %s210, 8
        %s212 = scalar_lea.vmem [#allocation10], %s211
        // Predicated region
        $region41: #{tpu_custom_call.1} parent=31 // pred_check
          %p213 = pneg %p103
        $region42: #{tpu_custom_call.1} parent=31 // pred_check_branch
          %215 = sbr.rel (%p213) target = $region44
        $region43: #{tpu_custom_call.1} parent=31 // pred_region
          %216 = dma.done %s209, 128
        $region44: #{tpu_custom_call.1} parent=31 // pred_fallthru
          _
        %p217 = pneg %p49
        %p218 = pneg %p46
        %p219 = pneg %p75
        %p220 = pneg %p72
        %s221 = sand.u32 %s16, 1
        %s222 = scalar_lea.sflag [#allocation7], %s221
        %s223 = sand.u32 %s90, 1
        %s224 = smul.addr %s223, 8
        %s225 = scalar_lea.vmem [#allocation10], %s224
        %p226 = pneg %p103
        %p227 = pneg %p100
        %p228 = pneg %p129
        %p229 = pneg %p126
        %p230 = scmp.lt.s32.totalorder %s20, 0
        %s231 = scalar_select %p230, %s20, 0
        %s232 = smul.addr %s231, 8
        %s233 = scalar_lea.vmem %s3, %s232
        %p234 = scmp.lt.s32.totalorder %s20, 0
        %s235 = scalar_select %p234, %s20, 0
        %s236 = smul.addr %s235, 8
        %s237 = scalar_lea.vmem %s3, %s236
        %p238 = scmp.eq.s32.totalorder %s21, 0
        // Predicated region
        $region45: #{tpu_custom_call.1} parent=31 // pred_check
          %p239 = pneg %p238
        $region46: #{tpu_custom_call.1} parent=31 // pred_check_branch
          %241 = sbr.rel (%p239) target = $region48
        $region47: #{tpu_custom_call.1} parent=31 // pred_region
          %v242 = vld [vmem:[#allocation6] sm:$0xff]
          %v243 = vld [vmem:[#allocation8] sm:$0xff]
          %v244 = vmul.f32 %v242, %v243
          %vm245 = vcmask 261120
          %v246 = vsel %vm245, %v244, 0.0
          %247 = vadd.xlane.f32.xlu0 %v246
          %v248 = vpop.xlane.xlu0 %247
          %v249 = vadd.f32 %v248, 0.0
          %v250 = vmul.f32 %v243, %v243
          %v251 = vsel %vm245, %v250, 0.0
          %252 = vadd.xlane.f32.xlu0 %v251
          %v253 = vpop.xlane.xlu0 %252
          %v254 = vadd.f32 %v253, 0.0
          %v255 = vmul.f32 %v242, %v242
          %v256 = vsel %vm245, %v255, 0.0
          %257 = vadd.xlane.f32.xlu0 %v256
          %v258 = vpop.xlane.xlu0 %257
          %v259 = vadd.f32 %v258, 0.0
          %v260 = vrsqrt.pop %v259
          %v261 = vmul.f32 %v259, %v260
          %vm262 = vcmp.eq.f32.partialorder %v259, inf
          %v263 = vsel %vm262, %v259, %v261
          %vm264 = vcmp.eq.f32.partialorder %v259, 0.0
          %v265 = vand.u32 %v259, 2147483648
          %v266 = vsel %vm264, %v265, %v263
          %v267 = vrsqrt.pop %v254
          %v268 = vmul.f32 %v254, %v267
          %vm269 = vcmp.eq.f32.partialorder %v254, inf
          %v270 = vsel %vm269, %v254, %v268
          %vm271 = vcmp.eq.f32.partialorder %v254, 0.0
          %v272 = vand.u32 %v254, 2147483648
          %v273 = vsel %vm271, %v272, %v270
          %v274 = vmul.f32 %v266, %v273
          %v275 = vmax.f32 %v274, 1e-08
          %v276 = vrcp.pop %v275
          %v277 = vmul.f32 %v249, %v276
          %v278 = vmul.f32 %v277, 2.0
          %vm279 = vcmask 7168
          %280 = vst.msk [vmem:[#allocation5] sm:$0xff] %vm279, %v266
          %281 = vst.msk [vmem:[#allocation4] sm:$0xff] %vm279, %v278
          %282 = vst.msk [vmem:[#allocation2] sm:$0xff] %vm279, %v278
          %283 = vst.msk [vmem:[#allocation3] sm:$0xff] %vm279, 1.0
        $region48: #{tpu_custom_call.1} parent=31 // pred_fallthru
          _
        %v284 = vld [vmem:[#allocation6] sm:$0xff]
        %v285 = vld [vmem:[%s212] sm:$0xff]
        %v286 = vmul.f32 %v284, %v285
        %vm287 = vcmask 261120
        %v288 = vsel %vm287, %v286, 0.0
        %289 = vadd.xlane.f32.xlu0 %v288
        %v290 = vpop.xlane.xlu0 %289
        %v291 = vadd.f32 %v290, 0.0
        %v292 = vmul.f32 %v285, %v285
        %v293 = vsel %vm287, %v292, 0.0
        %294 = vadd.xlane.f32.xlu0 %v293
        %v295 = vpop.xlane.xlu0 %294
        %v296 = vadd.f32 %v295, 0.0
        %v297 = vld [vmem:[#allocation5] sm:$0xff]
        %v298 = vrsqrt.pop %v296
        %v299 = vmul.f32 %v296, %v298
        %vm300 = vcmp.eq.f32.partialorder %v296, inf
        %v301 = vsel %vm300, %v296, %v299
        %vm302 = vcmp.eq.f32.partialorder %v296, 0.0
        %v303 = vand.u32 %v296, 2147483648
        %v304 = vsel %vm302, %v303, %v301
        %v305 = vmul.f32 %v297, %v304
        %v306 = vmax.f32 %v305, 1e-08
        %v307 = vrcp.pop %v306
        %v308 = vmul.f32 %v291, %v307
        %v309 = vmul.f32 %v308, 2.0
        %v310 = vld [vmem:[#allocation2] sm:$0xff]
        %v311 = vmax.f32 %v310, %v309
        %v312 = vld [vmem:[#allocation3] sm:$0xff]
        %v313 = vsub.f32 %v310, %v311
        %v314 = vmul.f32 %v313, 1.442695
        %v315 = vpow.pop %v314
        %v316 = vmul.f32 %v312, %v315
        %v317 = vsub.f32 %v309, %v311
        %v318 = vmul.f32 %v317, 1.442695
        %v319 = vpow.pop %v318
        %v320 = vadd.f32 %v316, %v319
        %vm321 = vcmask 7168
        %322 = vst.msk [vmem:[#allocation3] sm:$0xff] %vm321, %v320
        %323 = vst.msk [vmem:[#allocation2] sm:$0xff] %vm321, %v311
        %p324 = scmp.eq.s32.totalorder %s21, 2
        // Predicated region
        $region49: #{tpu_custom_call.1} parent=31 // pred_check
          %p325 = pneg %p324
        $region50: #{tpu_custom_call.1} parent=31 // pred_check_branch
          %327 = sbr.rel (%p325) target = $region52
        $region51: #{tpu_custom_call.1} parent=31 // pred_region
          %v328 = vld [vmem:[#allocation2] sm:$0xff]
          %v329 = vld [vmem:[#allocation3] sm:$0xff]
          %v330 = vlog2.pop %v329
          %v331 = vmul.f32 %v330, 0.6931472
          %v332 = vadd.f32 %v328, %v331
          %v333 = vld [vmem:[#allocation4] sm:$0xff]
          %v334 = vsub.f32 %v332, %v333
          %335 = vst.msk [vmem:[%s237] sm:$0xff] %vm321, %v334
        $region52: #{tpu_custom_call.1} parent=31 // pred_fallthru
          _
        %p336 = scmp.lt.s32.totalorder %s20, 0
        %s337 = scalar_select %p336, %s20, 0
        %s338 = smul.addr %s337, 8
        %s339 = scalar_lea.vmem %s3, %s338
        // Predicated region
        $region53: #{tpu_custom_call.1} parent=31 // pred_check
          %p340 = pneg %p126
        $region54: #{tpu_custom_call.1} parent=31 // pred_check_branch
          %342 = sbr.rel (%p340) target = $region56
        $region55: #{tpu_custom_call.1} parent=31 // pred_region
          _
        $region56: #{tpu_custom_call.1} parent=31 // pred_fallthru
          _
        // Predicated region
        $region57: #{tpu_custom_call.1} parent=31 // pred_check
          %p343 = pneg %p126
        $region58: #{tpu_custom_call.1} parent=31 // pred_check_branch
          %345 = sbr.rel (%p343) target = $region60
        $region59: #{tpu_custom_call.1} parent=31 // pred_region
          %p346 = scmp.lt.s32.totalorder %s20, 0
          %s347 = scalar_select %p346, %s20, 0
          %s348 = smul.addr %s347, 8
          %s349 = scalar_lea.vmem %s3, %s348
        $region60: #{tpu_custom_call.1} parent=31 // pred_fallthru
          _
      $region32: #{tpu_custom_call.1} parent=5 // pred_fallthru
        _
      %p350 = scmp.le.s32.totalorder 2, %s11
      // Predicated region
      $region61: #{tpu_custom_call.1} parent=5 // pred_check
        %p351 = pneg %p350
      $region62: #{tpu_custom_call.1} parent=5 // pred_check_branch
        %353 = sbr.rel (%p351) target = $region64
      $region63: #{tpu_custom_call.1} parent=5 // pred_region
        %s354 = ssub.s32 %s11, 2
      $region64: #{tpu_custom_call.1} parent=5 // pred_fallthru
        _
    $region6: #{tpu_custom_call.1} parent=1 // loop_footer
      %s15 = sadd.s32 1, %s11
    $region7: #{tpu_custom_call.1} parent=1 // loop_footer_branch
      %10 = sbr.rel target = $region3
    $region8: #{tpu_custom_call.1} parent=1 // loop_exit
      _
    %355 = vsyncpa [#allocation7], 1
    %s356 = scalar_lea.sflag [#allocation7], 1
    %357 = vsyncpa %s356, 1
    %358 = vsyncpa [#allocation9], 1

</llo_original>
